<compile_context>
chip_gen: v7x
topology: tpu7x:2x2x1
jax: 0.10.0
libtpu: 0.0.40
codegen_flags: <defaults>
</compile_context>

<pallas_src>
import functools
import numpy as np

import jax
import jax.numpy as jnp
from jax.experimental import pallas as pl
from jax.experimental.pallas import tpu as pltpu


LANE = 128      # lane width / alignment unit
TN = 128        # freq tile; fused matmul N = 2*TN = 256 (matches v6e/v7x MXU)


def _round_up(x: int, m: int) -> int:
    return ((x + m - 1) // m) * m


# ----------------------------- window / DFT setup (deterministic, in-script) --

def make_window(window: str, n: int) -> np.ndarray:
    if window == "rect":
        return np.ones(n, dtype=np.float32)
    elif window == "hann":
        k = np.arange(n)
        return (0.5 * (1.0 - np.cos(2.0 * np.pi * k / n))).astype(np.float32)
    elif window == "flat_top":
        # scipy.signal.windows.flattop(n, sym=False), computed in-script
        a = np.array([0.21557895, 0.41663158, 0.277263158, 0.083578947, 0.006947368])
        k = np.arange(n)
        w = np.zeros(n, dtype=np.float64)
        for i, ai in enumerate(a):
            w += ((-1.0) ** i) * ai * np.cos(2.0 * np.pi * i * k / n)
        return w.astype(np.float32)
    else:
        raise ValueError(f"Unknown window type: {window}")


def _dft_real_imag(n_fft: int, win_length: int, window: str):
    """numpy (n_fft, n_freq) cos / -sin bases with the centered window folded in."""
    win = make_window(window, win_length)
    if win_length < n_fft:  # torch.stft center-pads the window to n_fft
        left = (n_fft - win_length) // 2
        full = np.zeros(n_fft, dtype=np.float32)
        full[left:left + win_length] = win
        win = full
    n = np.arange(n_fft)[:, None].astype(np.float64)
    f = np.arange(n_fft // 2 + 1)[None, :].astype(np.float64)
    ang = 2.0 * np.pi * n * f / n_fft
    cr = (win[:, None] * np.cos(ang)).astype(np.float32)
    ci = (-win[:, None] * np.sin(ang)).astype(np.float32)
    return cr, ci


def windowed_dft_basis(n_fft: int, win_length: int, window: str):
    """Unpadded f32 (n_fft, n_freq) bases - used only by the pure-JAX reference."""
    cr, ci = _dft_real_imag(n_fft, win_length, window)
    return jnp.asarray(cr), jnp.asarray(ci)


def fused_padded_basis(n_fft: int, win_length: int, window: str, dtype, tn: int = TN):
    """Fused, zero-padded basis of shape (K_pad, nt * 2*tn).

    Freq tile t occupies columns [t*2*tn, (t+1)*2*tn): first tn columns are the
    cos basis for bins [t*tn, (t+1)*tn), next tn columns the -sin basis for the
    same bins.  Padded bins / padded K rows are zero (a loss no-op given eps>0).
    """
    cr, ci = _dft_real_imag(n_fft, win_length, window)
    n_freq = n_fft // 2 + 1
    k_pad = _round_up(n_fft, LANE)
    nf_pad = _round_up(n_freq, tn)
    nt = nf_pad // tn
    crp = np.zeros((k_pad, nf_pad), np.float32)
    cip = np.zeros((k_pad, nf_pad), np.float32)
    crp[:n_fft, :n_freq] = cr
    cip[:n_fft, :n_freq] = ci
    fused = np.zeros((k_pad, nt * 2 * tn), np.float32)
    for t in range(nt):
        fused[:, t * 2 * tn:t * 2 * tn + tn] = crp[:, t * tn:(t + 1) * tn]
        fused[:, t * 2 * tn + tn:(t + 1) * 2 * tn] = cip[:, t * tn:(t + 1) * tn]
    return jnp.asarray(fused, dtype=dtype), nt, k_pad


def frame_signal(x: jnp.ndarray, n_fft: int, hop: int) -> jnp.ndarray:
    """torch.stft framing (center=True, pad_mode='reflect'): (B, T) -> (B, Tf, n_fft)."""
    pad = n_fft // 2
    xp = jnp.pad(x, ((0, 0), (pad, pad)), mode="reflect")
    n_frames = 1 + (xp.shape[1] - n_fft) // hop
    idx = jnp.arange(n_frames)[:, None] * hop + jnp.arange(n_fft)[None, :]
    return xp[:, idx]  # (B, n_frames, n_fft)


# ----------------------------- tiling helpers ----------------------------------

def _choose_m_tile(tf: int):
    """Frame (M) tile (multiple of 16 for bf16 sublane packing) and padded count."""
    tf16 = _round_up(tf, 16)
    if tf16 <= 256:
        return tf16, tf16
    for tm in (256, 128, 64, 32, 16):
        padded = _round_up(tf16, tm)
        if padded - tf16 <= tf16 // 4:
            return tm, padded
    return 16, tf16  # unreachable (tm=16 always qualifies)


def _vmem_capacity_bytes() -> int:
    try:
        cap = getattr(pltpu.get_tpu_info(), "vmem_capacity_bytes", None)
        if cap:
            return int(cap)
    except Exception:
        pass
    return 128 * 1024 * 1024


def _vmem_limit_bytes(tm: int, k_pad: int, nt: int, itemsize: int) -> int:
    frames = 2 * (2 * tm) * k_pad * itemsize          # double-buffered stacked frame block
    basis = 2 * k_pad * (nt * 2 * TN) * itemsize      # resident basis (const index, 2 bufs alloc'd)
    temps = 8 * (2 * tm) * (2 * TN) * 4               # z / mag / log f32 temporaries headroom
    need = frames + basis + temps + (1 << 20)
    cap = 48 << 20                                    # v5e / v6e: 128 MiB physical VMEM
    if _vmem_capacity_bytes() <= (80 << 20):          # v7x: 64 MiB per TensorCore
        cap = 30 << 20
    limit = min(cap, max(16 << 20, int(1.3 * need)))
    return int(max(limit, need + (2 << 20)))          # never clamp below the estimate


# ----------------------------- Pallas kernel ----------------------------------

def _mss_kernel(f_ref, c_ref, out_ref, *, gamma: float, log_mag_eps: float,
                p: int, tn: int, nt: int, tm: int):
    # One grid step per (batch, frame-tile).  The frame block holds x frames in
    # rows [0, tm) and y frames in rows [tm, 2*tm); the full fused basis is
    # resident in VMEM (constant index_map -> a single DMA for the whole grid).
    frm = f_ref[0]                                      # (2*tm, K_pad), compute dtype
    acc = jnp.zeros((1, tn), jnp.float32)               # lane-partial sum of |d|^p
    for t in range(nt):                                 # static freq-tile loop
        c_t = c_ref[:, t * 2 * tn:(t + 1) * 2 * tn]     # (K_pad, 2*tn): [cos | -sin]
        # Single MXU matmul per (step, freq tile); f32 accumulation.
        z = jnp.dot(frm, c_t, preferred_element_type=jnp.float32)   # (2*tm, 2*tn)
        re = z[:, :tn]
        im = z[:, tn:]
        mag = jnp.sqrt(re * re + im * im)
        if log_mag_eps == 1.0:
            lm = jnp.log1p(gamma * mag)
        else:
            lm = jnp.log(gamma * mag + log_mag_eps)
        d = lm[tm:, :] - lm[:tm, :]                     # (tm, tn) log-mag diff
        if p == 2:
            pw = d * d
        elif p == 1:
            pw = jnp.abs(d)
        else:
            pw = jnp.abs(d) ** p
        acc = acc + jnp.sum(pw, axis=0, keepdims=True)  # sublane reduce only
    # Lane-partial output block; lane/sublane reduction happens in plain JAX.
    out_ref[0] = jnp.broadcast_to(acc, (8, tn))


def _mss_partial_sums_one_res(frames, basis, *, nt, k_pad, tm, B, mt,
                              gamma, log_mag_eps, p):
    """Per-batch sum of |log-mag diff|^p for one STFT resolution.

    frames: (B*mt, 2*tm, K_pad) stacked x/y frame tiles; basis: (K_pad, nt*2*TN).
    """
    n_steps, two_tm, _ = frames.shape
    itemsize = jnp.dtype(frames.dtype).itemsize
    kernel = functools.partial(_mss_kernel, gamma=float(gamma),
                               log_mag_eps=float(log_mag_eps), p=int(p),
                               tn=TN, nt=int(nt), tm=int(tm))
    out = pl.pallas_call(
        kernel,
        out_shape=jax.ShapeDtypeStruct((n_steps, 8, LANE), jnp.float32),
        grid_spec=pltpu.PrefetchScalarGridSpec(
            num_scalar_prefetch=0,
            grid=(n_steps,),
            in_specs=[
                # Frame tiles stream once, one block per step.
                pl.BlockSpec((1, two_tm, k_pad), lambda i: (i, 0, 0)),
                # Constant index -> the fused basis is DMA'd once and stays
                # resident in VMEM across every grid step.
                pl.BlockSpec(basis.shape, lambda i: (0, 0)),
            ],
            out_specs=pl.BlockSpec((1, 8, LANE), lambda i: (i, 0, 0)),
        ),
        compiler_params=pltpu.CompilerParams(
            dimension_semantics=("parallel",),
            vmem_limit_bytes=_vmem_limit_bytes(tm, k_pad, nt, itemsize),
        ),
    )(frames, basis)
    # Row 0 of each (8, 128) block holds the lane partials; reduce in JAX.
    return out.reshape(B, mt, 8, LANE)[:, :, 0, :].sum(axis=(1, 2))   # (B,)


# ----------------------------- module wrapper ----------------------------------

class LogMSSLossPallas:
    def __init__(self, fft_sizes=None, hop_sizes=None, win_lengths=None,
                 window: str = "flat_top", log_mag_eps: float = 1.0,
                 gamma: float = 1.0, p: int = 2, compute_dtype=jnp.bfloat16):
        if win_lengths is None:
            win_lengths = [67, 127, 257, 509, 1021, 2053]
        if fft_sizes is None:
            fft_sizes = win_lengths
        if hop_sizes is None:
            hop_sizes = [w // 2 for w in win_lengths]
        # Zero-padded freq bins / frame rows are a loss no-op only when the log
        # argument has a strictly positive floor (log1p path or eps > 0).
        assert log_mag_eps > 0.0, "log_mag_eps must be > 0 (padding would hit log(0))"
        self.fft_sizes = fft_sizes
        self.hop_sizes = hop_sizes
        self.win_lengths = win_lengths
        self.window = window
        self.log_mag_eps = log_mag_eps
        self.gamma = gamma
        self.p = p
        self.compute_dtype = compute_dtype
        # Fused, zero-padded bases for the kernel (lane/MXU aligned, compute dtype).
        self.bases = [fused_padded_basis(nf, wl, window, compute_dtype)
                      for nf, wl in zip(fft_sizes, win_lengths)]
        # Unpadded f32 bases only for the pure-JAX reference.
        self.ref_bases = [windowed_dft_basis(nf, wl, window)
                          for nf, wl in zip(fft_sizes, win_lengths)]

    def __call__(self, x: jnp.ndarray, x_target: jnp.ndarray) -> jnp.ndarray:
        assert x.ndim == x_target.ndim == 3
        assert x.shape[1] == x_target.shape[1] == 1
        x = x[:, 0, :]
        xt = x_target[:, 0, :]
        B = x.shape[0]
        per_batch = jnp.zeros((B,), jnp.float32)
        for (n_fft, hop), (basis, nt, k_pad) in zip(
                zip(self.fft_sizes, self.hop_sizes), self.bases):
            fx = frame_signal(x, n_fft, hop)
            fy = frame_signal(xt, n_fft, hop)
            Tf = fx.shape[1]
            tm, tf_pad = _choose_m_tile(Tf)
            mt = tf_pad // tm

            def prep(fr):
                # TODO(synk): keep HBM frames at K == n_fft and pad K inside the
                # kernel to avoid up to 1.9x padded HBM bytes for small n_fft.
                fr = jnp.pad(fr, ((0, 0), (0, tf_pad - Tf), (0, k_pad - n_fft)))
                return fr.astype(self.compute_dtype).reshape(B, mt, tm, k_pad)

            # Stack x over y along M inside each frame tile -> one matmul/step/tile.
            frames = jnp.concatenate([prep(fx), prep(fy)], axis=2)
            frames = frames.reshape(B * mt, 2 * tm, k_pad)

            ssum = _mss_partial_sums_one_res(
                frames, basis, nt=nt, k_pad=k_pad, tm=tm, B=B, mt=mt,
                gamma=self.gamma, log_mag_eps=self.log_mag_eps, p=self.p)
            per_batch = per_batch + ssum ** (1.0 / self.p)   # p-norm per batch/res
        return jnp.mean(per_batch)   # mean_b(sum_r dist) == spec semantics


# ----------------------------- pure-JAX reference (for validation) -------------

def _reference_loss(loss: LogMSSLossPallas, x, x_target):
    x = x[:, 0, :]
    xt = x_target[:, 0, :]
    dists = []
    for (n_fft, hop), (cr, ci) in zip(
            zip(loss.fft_sizes, loss.hop_sizes), loss.ref_bases):
        fx = frame_signal(x, n_fft, hop)
        fy = frame_signal(xt, n_fft, hop)

        def logmag(fr):
            re = jnp.einsum("btn,nf->btf", fr, cr)
            im = jnp.einsum("btn,nf->btf", fr, ci)
            mag = jnp.sqrt(re * re + im * im)
            if loss.log_mag_eps == 1.0:
                return jnp.log1p(loss.gamma * mag)
            return jnp.log(loss.gamma * mag + loss.log_mag_eps)

        d = logmag(fy) - logmag(fx)
        dist = jnp.sum(jnp.abs(d) ** loss.p, axis=(1, 2)) ** (1.0 / loss.p)
        dists.append(dist)
    return jnp.mean(jnp.sum(jnp.stack(dists, axis=1), axis=1))


# ----------------------------- main --------------------------------------------

if __name__ == "__main__":
    # Small shapes consistent with the module: (B, 1, T) audio, small STFT resolutions.
    B, T = 2, 256
    win_lengths = [16, 32, 64]
    key = jax.random.PRNGKey(0)
    kx, kt = jax.random.split(key)
    x = jax.random.normal(kx, (B, 1, T), dtype=jnp.float32)
    x_target = jax.random.normal(kt, (B, 1, T), dtype=jnp.float32)

    # Fast path: bf16 operands, f32 accumulation (default).
    loss_bf16 = LogMSSLossPallas(win_lengths=win_lengths, window="flat_top",
                                 log_mag_eps=1.0, gamma=1.0, p=2)
    out_bf16 = jax.block_until_ready(loss_bf16(x, x_target))

    # Bit-tight path: same kernel with f32 operands.
    loss_f32 = LogMSSLossPallas(win_lengths=win_lengths, window="flat_top",
                                log_mag_eps=1.0, gamma=1.0, p=2,
                                compute_dtype=jnp.float32)
    out_f32 = jax.block_until_ready(loss_f32(x, x_target))

    ref = jax.block_until_ready(_reference_loss(loss_f32, x, x_target))
    np.testing.assert_allclose(np.asarray(out_f32), np.asarray(ref), rtol=2e-3, atol=2e-3)
    # bf16 operand rounding (f32 accumulate) dominates the looser tolerance here.
    np.testing.assert_allclose(np.asarray(out_bf16), np.asarray(ref), rtol=1e-2, atol=1e-2)

    print("KERNEL_OK")
</pallas_src>

<mosaic_0001>
module attributes {stable_mosaic.version = 11 : i64} {
  func.func @_mss_kernel(%arg0: i32, %arg1: memref<1x96x128xbf16, #tpu.memory_space<vmem>>, %arg2: memref<128x256xbf16, #tpu.memory_space<vmem>>, %arg3: memref<1x8x128xf32, #tpu.memory_space<vmem>>) attributes {dimension_semantics = [#tpu.dimension_semantics<parallel>], iteration_bounds = array<i64: 2>, scalar_prefetch = 0 : i64, scratch_operands = 0 : i64, tpu.core_type = #tpu.core_type<tc>, window_params = [{transform_indices = @transform_0, window_bounds = array<i64: 1, 96, 128>}, {pipeline_mode = #tpu.pipeline_mode<synchronous>, transform_indices = @transform_1, window_bounds = array<i64: 128, 256>}, {transform_indices = @transform_2, window_bounds = array<i64: 1, 8, 128>}]} {
    %c0 = arith.constant 0 : index
    %c0_0 = arith.constant 0 : index
    %c0_1 = arith.constant 0 : index
    %0 = vector.load %arg1[%c0, %c0_0, %c0_1] : memref<1x96x128xbf16, #tpu.memory_space<vmem>>, vector<1x96x128xbf16>
    %1 = vector.shape_cast %0 : vector<1x96x128xbf16> to vector<96x128xbf16>
    %cst = arith.constant 0.000000e+00 : f32
    %2 = vector.broadcast %cst : f32 to vector<1x128xf32>
    %c0_2 = arith.constant 0 : index
    %c0_3 = arith.constant 0 : index
    %3 = vector.load %arg2[%c0_2, %c0_3] : memref<128x256xbf16, #tpu.memory_space<vmem>>, vector<128x256xbf16>
    %cst_4 = arith.constant dense<0.000000e+00> : vector<96x256xf32>
    %4 = tpu.matmul %1, %3, %cst_4 {dimension_numbers = #tpu.dot_dimension_numbers<[1], [0], [0], [1], [0, 0, 1, 1], [], []>} : vector<96x128xbf16>, vector<128x256xbf16>, vector<96x256xf32> -> vector<96x256xf32>
    %5 = vector.extract_strided_slice %4 {offsets = [0, 0], sizes = [96, 128], strides = [1, 1]} : vector<96x256xf32> to vector<96x128xf32>
    %6 = vector.extract_strided_slice %4 {offsets = [0, 128], sizes = [96, 128], strides = [1, 1]} : vector<96x256xf32> to vector<96x128xf32>
    %7 = arith.mulf %5, %5 : vector<96x128xf32>
    %8 = arith.mulf %6, %6 : vector<96x128xf32>
    %9 = arith.addf %7, %8 : vector<96x128xf32>
    %10 = math.sqrt %9 : vector<96x128xf32>
    %cst_5 = arith.constant 1.000000e+00 : f32
    %11 = vector.broadcast %cst_5 : f32 to vector<96x128xf32>
    %12 = arith.mulf %11, %10 : vector<96x128xf32>
    %13 = math.log1p %12 : vector<96x128xf32>
    %14 = vector.extract_strided_slice %13 {offsets = [48, 0], sizes = [48, 128], strides = [1, 1]} : vector<96x128xf32> to vector<48x128xf32>
    %15 = vector.extract_strided_slice %13 {offsets = [0, 0], sizes = [48, 128], strides = [1, 1]} : vector<96x128xf32> to vector<48x128xf32>
    %16 = arith.subf %14, %15 : vector<48x128xf32>
    %17 = arith.mulf %16, %16 : vector<48x128xf32>
    %cst_6 = arith.constant dense<0.000000e+00> : vector<128xf32>
    %18 = vector.multi_reduction <add>, %17, %cst_6 [0] : vector<48x128xf32> to vector<128xf32>
    %19 = vector.shape_cast %18 : vector<128xf32> to vector<1x128xf32>
    %20 = arith.addf %2, %19 : vector<1x128xf32>
    %21 = vector.shape_cast %20 : vector<1x128xf32> to vector<1x128xf32>
    %22 = vector.broadcast %21 : vector<1x128xf32> to vector<8x128xf32>
    %c0_7 = arith.constant 0 : index
    %c0_8 = arith.constant 0 : index
    %c0_9 = arith.constant 0 : index
    %23 = vector.load %arg3[%c0_7, %c0_8, %c0_9] : memref<1x8x128xf32, #tpu.memory_space<vmem>>, vector<1x8x128xf32>
    %24 = vector.shape_cast %23 : vector<1x8x128xf32> to vector<8x128xf32>
    %25 = vector.shape_cast %22 : vector<8x128xf32> to vector<1x8x128xf32>
    tpu.vector_store %arg3[%c0_7, %c0_8, %c0_9], %25 {strides = array<i32>} : memref<1x8x128xf32, #tpu.memory_space<vmem>>, vector<1x8x128xf32>,
    return
  }
  func.func @transform_0(%arg0: i32) -> (i32, i32, i32) {
    %c0_i32 = arith.constant 0 : i32
    %c0_i32_0 = arith.constant 0 : i32
    %c0_i32_1 = arith.constant 0 : i32
    return %arg0, %c0_i32, %c0_i32_0 : i32, i32, i32
  }
  func.func @transform_1(%arg0: i32) -> (i32, i32) {
    %c0_i32 = arith.constant 0 : i32
    %c0_i32_0 = arith.constant 0 : i32
    %c0_i32_1 = arith.constant 0 : i32
    return %c0_i32, %c0_i32_0 : i32, i32
  }
  func.func @transform_2(%arg0: i32) -> (i32, i32, i32) {
    %c0_i32 = arith.constant 0 : i32
    %c0_i32_0 = arith.constant 0 : i32
    %c0_i32_1 = arith.constant 0 : i32
    return %arg0, %c0_i32, %c0_i32_0 : i32, i32, i32
  }
}

</mosaic_0001>

<llo_original>
// kernel: tpu_custom_call.1
$region0: #{tpu_custom_call.1}
  #allocation0 [shape = 'u32[]', space=smem, size = 0x4, offset = 0x4, fixed_abs, tag = 'smem constant byte address 0x4 - core index']
  #allocation1 [shape = 'u32[144,128]{1,0:T(1,128)}', space=vmem, size = 0x12000, scoped, tag = 'internal scratch']
  %s0 = inlined_call_operand.hbm [shape: bf16[2,96,128], index: 0, kind: input, shape index: {}]
  %s1 = inlined_call_operand.hbm [shape: bf16[128,256], index: 1, kind: input, shape index: {}]
  %s2 = inlined_call_operand.hbm [shape: f32[2,8,128], index: 2, kind: output, shape index: {}]
  %s3 = sld [smem:[#allocation0]]
  $region49: #{tpu_custom_call.1} parent=0
    _
  %s5 = ssub.s32 1, %s3
  %s6 = scalar_select 0, %s5, %s3
  $region1: #{tpu_custom_call.1} parent=0
    #allocation2 [shape = 'u8[49152]{0}', space=vmem, size = 0xc000, scoped, tag = 'input window, operand 0']
    #allocation3 [shape = 's32[2]{0}', space=sflag, size = 0x8, scoped, tag = 'scoped memory for tpu_custom_call.1']
    #allocation4 [shape = 's32[2]{0}', space=sflag, size = 0x8, scoped, tag = 'scoped memory for tpu_custom_call.1']
    #allocation5 [shape = 'u8[65536]{0}', space=vmem, size = 0x10000, scoped, tag = 'input window, operand 1, single buffered']
    #allocation6 [shape = 's32[1]{0}', space=sflag, size = 0x4, scoped, tag = 'scoped memory for tpu_custom_call.1']
    #allocation7 [shape = 'u8[8192]{0}', space=vmem, size = 0x2000, scoped, tag = 'output window, operand 0']
    %7 = vsyncpa [#allocation3], 0
    %s8 = scalar_lea.sflag [#allocation3], 1
    %9 = vsyncpa %s8, 0
    %10 = vsyncpa [#allocation6], 0
    %11 = vsyncpa [#allocation4], 0
    %s12 = scalar_lea.sflag [#allocation4], 1
    %13 = vsyncpa %s12, 0
    loop: start=0, step=1, limit=4
    $region2: #{tpu_custom_call.1} parent=1 // loop_pre_header
      _
    $region3: #{tpu_custom_call.1} parent=1 // loop_header
      %s15 = sphi 0, %s19
      %p16 = scmp.ge.s32.totalorder %s15, 4
      %s25 = sphi 0, %s27
      %s28 = sphi 0, %s25
      %s29 = sphi 0, %s28
      %s45 = sphi 0, %s29
      %s49 = sphi 0, %s49
      %s51 = sphi 0, %s49
      %s52 = sphi 0, %s51
      %s66 = sphi 0, %s52
      %s72 = sphi 0, %s74
      %s75 = sphi 0, %s72
      %s76 = sphi 0, %s75
      %s92 = sphi 0, %s76
    $region4: #{tpu_custom_call.1} parent=1 // loop_header_branch
      %18 = sbr.rel (%p16) target = $region8
    $region5: #{tpu_custom_call.1} parent=1 // loop_body
      %s20 = ssub.s32 %s15, 1
      %s21 = ssub.s32 %s15, 2
      %s22 = sadd.s32 %s15, 1
      %s23 = ssub.s32 %s15, %s22
      %p24 = scmp.eq.s32.totalorder %s23, 0
      %s26 = sadd.s32 %s25, 1
      %s27 = scalar_select %p24, %s25, %s26
      %p30 = pneg %p24
      %p31 = scmp.eq.s32.totalorder %s15, 1
      %p32 = por %p30, %p31
      %p33 = scmp.ne.s32.totalorder %s25, %s28
      %p34 = scmp.eq.s32.totalorder %s15, 0
      %p35 = por %p33, %p34
      %p36 = scmp.ne.s32.totalorder %s25, %s28
      %p37 = scmp.eq.s32.totalorder %s20, 1
      %p38 = por %p36, %p37
      %p39 = scmp.ne.s32.totalorder %s28, %s29
      %p40 = scmp.eq.s32.totalorder %s20, 0
      %p41 = por %p39, %p40
      %p42 = scmp.ne.s32.totalorder %s28, %s29
      %p43 = scmp.eq.s32.totalorder %s21, 1
      %p44 = por %p42, %p43
      %p46 = scmp.ne.s32.totalorder %s29, %s45
      %p47 = scmp.eq.s32.totalorder %s21, 0
      %p48 = por %p46, %p47
      %s50 = sadd.s32 %s49, 1
      %p53 = scmp.eq.s32.totalorder %s15, 1
      %p54 = scmp.ne.s32.totalorder %s49, %s51
      %p55 = scmp.eq.s32.totalorder %s15, 0
      %p56 = por %p54, %p55
      %p57 = scmp.ne.s32.totalorder %s49, %s51
      %p58 = scmp.eq.s32.totalorder %s20, 1
      %p59 = por %p57, %p58
      %p60 = scmp.ne.s32.totalorder %s51, %s52
      %p61 = scmp.eq.s32.totalorder %s20, 0
      %p62 = por %p60, %p61
      %p63 = scmp.ne.s32.totalorder %s51, %s52
      %p64 = scmp.eq.s32.totalorder %s21, 1
      %p65 = por %p63, %p64
      %p67 = scmp.ne.s32.totalorder %s52, %s66
      %p68 = scmp.eq.s32.totalorder %s21, 0
      %p69 = por %p67, %p68
      %s70 = ssub.s32 %s15, %s22
      %p71 = scmp.eq.s32.totalorder %s70, 0
      %s73 = sadd.s32 %s72, 1
      %s74 = scalar_select %p71, %s72, %s73
      %p77 = pneg %p71
      %p78 = scmp.eq.s32.totalorder %s15, 1
      %p79 = por %p77, %p78
      %p80 = scmp.ne.s32.totalorder %s72, %s75
      %p81 = scmp.eq.s32.totalorder %s15, 0
      %p82 = por %p80, %p81
      %p83 = scmp.ne.s32.totalorder %s72, %s75
      %p84 = scmp.eq.s32.totalorder %s20, 1
      %p85 = por %p83, %p84
      %p86 = scmp.ne.s32.totalorder %s75, %s76
      %p87 = scmp.eq.s32.totalorder %s20, 0
      %p88 = por %p86, %p87
      %p89 = scmp.ne.s32.totalorder %s75, %s76
      %p90 = scmp.eq.s32.totalorder %s21, 1
      %p91 = por %p89, %p90
      %p93 = scmp.ne.s32.totalorder %s76, %s92
      %p94 = scmp.eq.s32.totalorder %s21, 0
      %p95 = por %p93, %p94
      %p96 = scmp.le.s32.totalorder 1, %s15
      %p97 = scmp.lt.s32.totalorder %s15, 3
      %p98 = pnand %p96, %p97
      %p99 = pneg %p98
      // Predicated region
      $region9: #{tpu_custom_call.1} parent=5 // pred_check
        _
      $region10: #{tpu_custom_call.1} parent=5 // pred_check_branch
        %101 = sbr.rel (%p98) target = $region12
      $region11: #{tpu_custom_call.1} parent=5 // pred_region
        %s102 = ssub.s32 %s15, 1
        // Predicated region
        $region13: #{tpu_custom_call.1} parent=11 // pred_check
          %p103 = pneg %p62
        $region14: #{tpu_custom_call.1} parent=11 // pred_check_branch
          %105 = sbr.rel (%p103) target = $region16
        $region15: #{tpu_custom_call.1} parent=11 // pred_region
          %s107 = ssub.s32 2048, 2048
          %108 = vsyncadd [#allocation6], %s107
          %s109 = sshll.u32 [#allocation5], 4
          %s110 = int_to_ptr.vmem [resolvable:$true] %s109
          %115 = dma.hbm_to_vmem [thread:$0]  %s1, 2048, %s110, [#allocation6], 128, 128, 8
        $region16: #{tpu_custom_call.1} parent=11 // pred_fallthru
          _
      $region12: #{tpu_custom_call.1} parent=5 // pred_fallthru
        _
      %p116 = scmp.lt.s32.totalorder %s15, 2
      // Predicated region
      $region17: #{tpu_custom_call.1} parent=5 // pred_check
        %p117 = pneg %p116
      $region18: #{tpu_custom_call.1} parent=5 // pred_check_branch
        %119 = sbr.rel (%p117) target = $region20
      $region19: #{tpu_custom_call.1} parent=5 // pred_region
        // Predicated region
        $region21: #{tpu_custom_call.1} parent=19 // pred_check
          %p120 = pneg %p35
        $region22: #{tpu_custom_call.1} parent=19 // pred_check_branch
          %122 = sbr.rel (%p120) target = $region24
        $region23: #{tpu_custom_call.1} parent=19 // pred_region
          %s123 = sand.u32 %s25, 1
          %s124 = scalar_lea.sflag [#allocation3], %s123
          %s125 = sand.u32 %s25, 1
          %s126 = smul.addr %s125, 48
          %s127 = scalar_lea.vmem [#allocation2], %s126
          %s129 = ssub.s32 768, 768
          %130 = vsyncadd %s124, %s129
          %s131 = smul.addr %s15, 12
          %s132 = smul.addr %s131, 64
          %s133 = scalar_lea.hbm %s0, %s132
          %s134 = sshll.u32 %s127, 4
          %s135 = int_to_ptr.vmem [resolvable:$true] %s134
          %140 = dma.hbm_to_vmem [thread:$0]  %s133, 768, %s135, %s124, 64, 64, 4
        $region24: #{tpu_custom_call.1} parent=19 // pred_fallthru
          _
      $region20: #{tpu_custom_call.1} parent=5 // pred_fallthru
        _
      %p141 = scmp.le.s32.totalorder 1, %s15
      %p142 = scmp.lt.s32.totalorder %s15, 3
      %p143 = pnand %p141, %p142
      %p144 = pneg %p143
      // Predicated region
      $region25: #{tpu_custom_call.1} parent=5 // pred_check
        _
      $region26: #{tpu_custom_call.1} parent=5 // pred_check_branch
        %146 = sbr.rel (%p143) target = $region28
      $region27: #{tpu_custom_call.1} parent=5 // pred_region
        %s147 = ssub.s32 %s15, 1
        %s148 = sand.u32 %s28, 1
        %s149 = scalar_lea.sflag [#allocation3], %s148
        %s150 = sand.u32 %s28, 1
        %s151 = smul.addr %s150, 48
        %s152 = scalar_lea.vmem [#allocation2], %s151
        // Predicated region
        $region29: #{tpu_custom_call.1} parent=27 // pred_check
          %p153 = pneg %p41
        $region30: #{tpu_custom_call.1} parent=27 // pred_check_branch
          %155 = sbr.rel (%p153) target = $region32
        $region31: #{tpu_custom_call.1} parent=27 // pred_region
          %156 = dma.done %s149, 768
        $region32: #{tpu_custom_call.1} parent=27 // pred_fallthru
          _
        // Predicated region
        $region33: #{tpu_custom_call.1} parent=27 // pred_check
          %p157 = pneg %p62
        $region34: #{tpu_custom_call.1} parent=27 // pred_check_branch
          %159 = sbr.rel (%p157) target = $region36
        $region35: #{tpu_custom_call.1} parent=27 // pred_region
          %160 = dma.done [#allocation6], 2048
        $region36: #{tpu_custom_call.1} parent=27 // pred_fallthru
          _
        %s161 = sand.u32 %s28, 1
        %s162 = scalar_lea.sflag [#allocation3], %s161
        %s163 = sand.u32 %s28, 1
        %s164 = smul.addr %s163, 48
        %s165 = scalar_lea.vmem [#allocation2], %s164
        %p166 = pneg %p41
        %p167 = pneg %p38
        %p168 = pneg %p62
        %p169 = pneg %p59
        %p170 = pneg %p88
        %p171 = pneg %p85
        %s172 = sand.u32 %s75, 1
        %s173 = scalar_lea.sflag [#allocation4], %s172
        %s174 = sand.u32 %s75, 1
        %s175 = smul.addr %s174, 8
        %s176 = scalar_lea.vmem [#allocation7], %s175
        %v178 = vld [vmem:[%s152] sm:$0xf]
        %v179 = vld [vmem:[%s152 + $0x4] sm:$0xf]
        %v180 = vld [vmem:[%s152 + $0x8] sm:$0xf]
        %v181 = vld [vmem:[%s152 + $0xc] sm:$0xf]
        %v182 = vld [vmem:[%s152 + $0x10] sm:$0xf]
        %v183 = vld [vmem:[%s152 + $0x14] sm:$0xf]
        %v184 = vld [vmem:[%s152 + $0x18] sm:$0xf]
        %v185 = vld [vmem:[%s152 + $0x1c] sm:$0xf]
        %v186 = vld [vmem:[%s152 + $0x20] sm:$0xf]
        %v187 = vld [vmem:[%s152 + $0x24] sm:$0xf]
        %v188 = vld [vmem:[%s152 + $0x28] sm:$0xf]
        %v189 = vld [vmem:[%s152 + $0x2c] sm:$0xf]
        %v190 = vld [vmem:[#allocation5] sm:$0xff]
        %v191 = vld [vmem:[#allocation5 + $0x8] sm:$0xff]
        %v192 = vld [vmem:[#allocation5 + $0x10] sm:$0xff]
        %v193 = vld [vmem:[#allocation5 + $0x18] sm:$0xff]
        %v194 = vld [vmem:[#allocation5 + $0x20] sm:$0xff]
        %v195 = vld [vmem:[#allocation5 + $0x28] sm:$0xff]
        %v196 = vld [vmem:[#allocation5 + $0x30] sm:$0xff]
        %v197 = vld [vmem:[#allocation5 + $0x38] sm:$0xff]
        %v198 = vld [vmem:[#allocation5 + $0x40] sm:$0xff]
        %v199 = vld [vmem:[#allocation5 + $0x48] sm:$0xff]
        %v200 = vld [vmem:[#allocation5 + $0x50] sm:$0xff]
        %v201 = vld [vmem:[#allocation5 + $0x58] sm:$0xff]
        %v202 = vld [vmem:[#allocation5 + $0x60] sm:$0xff]
        %v203 = vld [vmem:[#allocation5 + $0x68] sm:$0xff]
        %v204 = vld [vmem:[#allocation5 + $0x70] sm:$0xff]
        %v205 = vld [vmem:[#allocation5 + $0x78] sm:$0xff]
        %v218 = vunpack.c.l.b16 %v178
        %v219 = vunpack.c.l.b16 %v179
        %v220 = vunpack.c.l.b16 %v180
        %v221 = vunpack.c.l.b16 %v181
        %v222 = vunpack.c.l.b16 %v182
        %v223 = vunpack.c.l.b16 %v183
        %v224 = vunpack.c.l.b16 %v184
        %v225 = vunpack.c.l.b16 %v185
        %v226 = vunpack.c.l.b16 %v186
        %v227 = vunpack.c.l.b16 %v187
        %v228 = vunpack.c.l.b16 %v188
        %v229 = vunpack.c.l.b16 %v189
        %v230 = vpack.c.b16 %v219, %v218
        %v231 = vpack.c.b16 %v221, %v220
        %v232 = vpack.c.b16 %v223, %v222
        %v233 = vpack.c.b16 %v225, %v224
        %v234 = vpack.c.b16 %v227, %v226
        %v235 = vpack.c.b16 %v229, %v228
        %v258 = vunpack.c.l.b16 %v190
        %v259 = vunpack.c.h.b16 %v190
        %v260 = vunpack.c.l.b16 %v191
        %v261 = vunpack.c.h.b16 %v191
        %v262 = vunpack.c.l.b16 %v192
        %v263 = vunpack.c.h.b16 %v192
        %v264 = vunpack.c.l.b16 %v193
        %v265 = vunpack.c.h.b16 %v193
        %v266 = vunpack.c.l.b16 %v194
        %v267 = vunpack.c.h.b16 %v194
        %v268 = vunpack.c.l.b16 %v195
        %v269 = vunpack.c.h.b16 %v195
        %v270 = vunpack.c.l.b16 %v196
        %v271 = vunpack.c.h.b16 %v196
        %v272 = vunpack.c.l.b16 %v197
        %v273 = vunpack.c.h.b16 %v197
        %v274 = vunpack.c.l.b16 %v198
        %v275 = vunpack.c.h.b16 %v198
        %v276 = vunpack.c.l.b16 %v199
        %v277 = vunpack.c.h.b16 %v199
        %v278 = vunpack.c.l.b16 %v200
        %v279 = vunpack.c.h.b16 %v200
        %v280 = vunpack.c.l.b16 %v201
        %v281 = vunpack.c.h.b16 %v201
        %v282 = vunpack.c.l.b16 %v202
        %v283 = vunpack.c.h.b16 %v202
        %v284 = vunpack.c.l.b16 %v203
        %v285 = vunpack.c.h.b16 %v203
        %v286 = vunpack.c.l.b16 %v204
        %v287 = vunpack.c.h.b16 %v204
        %v288 = vunpack.c.l.b16 %v205
        %v289 = vunpack.c.h.b16 %v205
        %v290 = vpack.c.b16 %v260, %v258
        %v291 = vpack.c.b16 %v261, %v259
        %v292 = vpack.c.b16 %v264, %v262
        %v293 = vpack.c.b16 %v265, %v263
        %v294 = vpack.c.b16 %v268, %v266
        %v295 = vpack.c.b16 %v269, %v267
        %v296 = vpack.c.b16 %v272, %v270
        %v297 = vpack.c.b16 %v273, %v271
        %v298 = vpack.c.b16 %v276, %v274
        %v299 = vpack.c.b16 %v277, %v275
        %v300 = vpack.c.b16 %v280, %v278
        %v301 = vpack.c.b16 %v281, %v279
        %v302 = vpack.c.b16 %v284, %v282
        %v303 = vpack.c.b16 %v285, %v283
        %v304 = vpack.c.b16 %v288, %v286
        %v305 = vpack.c.b16 %v289, %v287
        %322 = vmatprep.subr.bf16.mxu0 %v291
        %323 = vmatpush1.bf16.msra.mxu0 %v290
        %324 = vmatprep.subr.bf16.mxu0 %v293
        %325 = vmatpush1.bf16.msra.mxu0 %v292
        %326 = vmatprep.subr.bf16.mxu0 %v295
        %327 = vmatpush1.bf16.msra.mxu0 %v294
        %328 = vmatprep.subr.bf16.mxu0 %v297
        %329 = vmatpush1.bf16.msra.mxu0 %v296
        %330 = vmatprep.subr.bf16.mxu0 %v299
        %331 = vmatpush1.bf16.msra.mxu0 %v298
        %332 = vmatprep.subr.bf16.mxu0 %v301
        %333 = vmatpush1.bf16.msra.mxu0 %v300
        %334 = vmatprep.subr.bf16.mxu0 %v303
        %335 = vmatpush1.bf16.msra.mxu0 %v302
        %336 = vmatprep.subr.bf16.mxu0 %v305
        %337 = vmatpush1.bf16.msra.mxu0 %v304
        %338 = vmatprep.subr.bf16.mxu0 0
        %339 = vmatpush1.bf16.msra.mxu0 0
        %340 = vmatprep.subr.bf16.mxu0 0
        %341 = vmatpush1.bf16.msra.mxu0 0
        %342 = vmatprep.subr.bf16.mxu0 0
        %343 = vmatpush1.bf16.msra.mxu0 0
        %344 = vmatprep.subr.bf16.mxu0 0
        %345 = vmatpush1.bf16.msra.mxu0 0
        %346 = vmatprep.subr.bf16.mxu0 0
        %347 = vmatpush1.bf16.msra.mxu0 0
        %348 = vmatprep.subr.bf16.mxu0 0
        %349 = vmatpush1.bf16.msra.mxu0 0
        %350 = vmatprep.subr.bf16.mxu0 0
        %351 = vmatpush1.bf16.msra.mxu0 0
        %352 = vmatprep.subr.bf16.mxu0 0
        %353 = vmatpush1.bf16.msra.mxu0 0
        %354 = vmatprep.mubr.bf16.mxu0 0
        %355 = vmatmul.mubr.bf16.gmra.mrb[0].mxu0 %v230
        %v356 = vpop.f32.mrb[0].mxu0
        %v357 = vadd.f32 0.0, %v356
        %v358 = vpop.f32.mrb[0].mxu0
        %v359 = vadd.f32 0.0, %v358
        %v360 = vpop.f32.mrb[0].mxu0
        %v361 = vadd.f32 0.0, %v360
        %v362 = vpop.f32.mrb[0].mxu0
        %v363 = vadd.f32 0.0, %v362
        %364 = vmatprep.mubr.bf16.mxu0 0
        %365 = vmatmul.mubr.bf16.gmra.mrb[0].mxu0 %v231
        %v366 = vpop.f32.mrb[0].mxu0
        %v367 = vadd.f32 0.0, %v366
        %v368 = vpop.f32.mrb[0].mxu0
        %v369 = vadd.f32 0.0, %v368
        %v370 = vpop.f32.mrb[0].mxu0
        %v371 = vadd.f32 0.0, %v370
        %v372 = vpop.f32.mrb[0].mxu0
        %v373 = vadd.f32 0.0, %v372
        %374 = vmatprep.mubr.bf16.mxu0 0
        %375 = vmatmul.mubr.bf16.gmra.mrb[0].mxu0 %v232
        %v376 = vpop.f32.mrb[0].mxu0
        %v377 = vadd.f32 0.0, %v376
        %v378 = vpop.f32.mrb[0].mxu0
        %v379 = vadd.f32 0.0, %v378
        %v380 = vpop.f32.mrb[0].mxu0
        %v381 = vadd.f32 0.0, %v380
        %v382 = vpop.f32.mrb[0].mxu0
        %v383 = vadd.f32 0.0, %v382
        %384 = vmatprep.mubr.bf16.mxu0 0
        %385 = vmatmul.mubr.bf16.gmra.mrb[0].mxu0 %v233
        %v386 = vpop.f32.mrb[0].mxu0
        %v387 = vadd.f32 0.0, %v386
        %v388 = vpop.f32.mrb[0].mxu0
        %v389 = vadd.f32 0.0, %v388
        %v390 = vpop.f32.mrb[0].mxu0
        %v391 = vadd.f32 0.0, %v390
        %v392 = vpop.f32.mrb[0].mxu0
        %v393 = vadd.f32 0.0, %v392
        %394 = vmatprep.mubr.bf16.mxu0 0
        %395 = vmatmul.mubr.bf16.gmra.mrb[0].mxu0 %v234
        %v396 = vpop.f32.mrb[0].mxu0
        %v397 = vadd.f32 0.0, %v396
        %v398 = vpop.f32.mrb[0].mxu0
        %v399 = vadd.f32 0.0, %v398
        %v400 = vpop.f32.mrb[0].mxu0
        %v401 = vadd.f32 0.0, %v400
        %v402 = vpop.f32.mrb[0].mxu0
        %v403 = vadd.f32 0.0, %v402
        %404 = vmatprep.mubr.bf16.mxu0 0
        %405 = vmatmul.mubr.bf16.gmra.mrb[0].mxu0 %v235
        %v406 = vpop.f32.mrb[0].mxu0
        %v407 = vadd.f32 0.0, %v406
        %v408 = vpop.f32.mrb[0].mxu0
        %v409 = vadd.f32 0.0, %v408
        %v410 = vpop.f32.mrb[0].mxu0
        %v411 = vadd.f32 0.0, %v410
        %v412 = vpop.f32.mrb[0].mxu0
        %v413 = vadd.f32 0.0, %v412
        %414 = vdwg.mxu0
        %v415 = vmul.f32 %v357, %v357
        %v416 = vmul.f32 %v361, %v361
        %v417 = vmul.f32 %v367, %v367
        %v418 = vmul.f32 %v371, %v371
        %v419 = vmul.f32 %v377, %v377
        %v420 = vmul.f32 %v381, %v381
        %v421 = vmul.f32 %v387, %v387
        %v422 = vmul.f32 %v391, %v391
        %v423 = vmul.f32 %v397, %v397
        %v424 = vmul.f32 %v401, %v401
        %v425 = vmul.f32 %v407, %v407
        %v426 = vmul.f32 %v411, %v411
        %v427 = vmul.f32 %v359, %v359
        %v428 = vmul.f32 %v363, %v363
        %v429 = vmul.f32 %v369, %v369
        %v430 = vmul.f32 %v373, %v373
        %v431 = vmul.f32 %v379, %v379
        %v432 = vmul.f32 %v383, %v383
        %v433 = vmul.f32 %v389, %v389
        %v434 = vmul.f32 %v393, %v393
        %v435 = vmul.f32 %v399, %v399
        %v436 = vmul.f32 %v403, %v403
        %v437 = vmul.f32 %v409, %v409
        %v438 = vmul.f32 %v413, %v413
        %v439 = vadd.f32 %v415, %v427
        %v440 = vadd.f32 %v416, %v428
        %v441 = vadd.f32 %v417, %v429
        %v442 = vadd.f32 %v418, %v430
        %v443 = vadd.f32 %v419, %v431
        %v444 = vadd.f32 %v420, %v432
        %v445 = vadd.f32 %v421, %v433
        %v446 = vadd.f32 %v422, %v434
        %v447 = vadd.f32 %v423, %v435
        %v448 = vadd.f32 %v424, %v436
        %v449 = vadd.f32 %v425, %v437
        %v450 = vadd.f32 %v426, %v438
        %v451 = vrsqrt.pop %v439
        %v452 = vmul.f32 %v439, %v451
        %vm453 = vcmp.eq.f32.partialorder %v439, inf
        %v454 = vsel %vm453, %v439, %v452
        %vm455 = vcmp.eq.f32.partialorder %v439, 0.0
        %v456 = vand.u32 %v439, 2147483648
        %v457 = vsel %vm455, %v456, %v454
        %v458 = vrsqrt.pop %v440
        %v459 = vmul.f32 %v440, %v458
        %vm460 = vcmp.eq.f32.partialorder %v440, inf
        %v461 = vsel %vm460, %v440, %v459
        %vm462 = vcmp.eq.f32.partialorder %v440, 0.0
        %v463 = vand.u32 %v440, 2147483648
        %v464 = vsel %vm462, %v463, %v461
        %v465 = vrsqrt.pop %v441
        %v466 = vmul.f32 %v441, %v465
        %vm467 = vcmp.eq.f32.partialorder %v441, inf
        %v468 = vsel %vm467, %v441, %v466
        %vm469 = vcmp.eq.f32.partialorder %v441, 0.0
        %v470 = vand.u32 %v441, 2147483648
        %v471 = vsel %vm469, %v470, %v468
        %v472 = vrsqrt.pop %v442
        %v473 = vmul.f32 %v442, %v472
        %vm474 = vcmp.eq.f32.partialorder %v442, inf
        %v475 = vsel %vm474, %v442, %v473
        %vm476 = vcmp.eq.f32.partialorder %v442, 0.0
        %v477 = vand.u32 %v442, 2147483648
        %v478 = vsel %vm476, %v477, %v475
        %v479 = vrsqrt.pop %v443
        %v480 = vmul.f32 %v443, %v479
        %vm481 = vcmp.eq.f32.partialorder %v443, inf
        %v482 = vsel %vm481, %v443, %v480
        %vm483 = vcmp.eq.f32.partialorder %v443, 0.0
        %v484 = vand.u32 %v443, 2147483648
        %v485 = vsel %vm483, %v484, %v482
        %v486 = vrsqrt.pop %v444
        %v487 = vmul.f32 %v444, %v486
        %vm488 = vcmp.eq.f32.partialorder %v444, inf
        %v489 = vsel %vm488, %v444, %v487
        %vm490 = vcmp.eq.f32.partialorder %v444, 0.0
        %v491 = vand.u32 %v444, 2147483648
        %v492 = vsel %vm490, %v491, %v489
        %v493 = vrsqrt.pop %v445
        %v494 = vmul.f32 %v445, %v493
        %vm495 = vcmp.eq.f32.partialorder %v445, inf
        %v496 = vsel %vm495, %v445, %v494
        %vm497 = vcmp.eq.f32.partialorder %v445, 0.0
        %v498 = vand.u32 %v445, 2147483648
        %v499 = vsel %vm497, %v498, %v496
        %v500 = vrsqrt.pop %v446
        %v501 = vmul.f32 %v446, %v500
        %vm502 = vcmp.eq.f32.partialorder %v446, inf
        %v503 = vsel %vm502, %v446, %v501
        %vm504 = vcmp.eq.f32.partialorder %v446, 0.0
        %v505 = vand.u32 %v446, 2147483648
        %v506 = vsel %vm504, %v505, %v503
        %v507 = vrsqrt.pop %v447
        %v508 = vmul.f32 %v447, %v507
        %vm509 = vcmp.eq.f32.partialorder %v447, inf
        %v510 = vsel %vm509, %v447, %v508
        %vm511 = vcmp.eq.f32.partialorder %v447, 0.0
        %v512 = vand.u32 %v447, 2147483648
        %v513 = vsel %vm511, %v512, %v510
        %v514 = vrsqrt.pop %v448
        %v515 = vmul.f32 %v448, %v514
        %vm516 = vcmp.eq.f32.partialorder %v448, inf
        %v517 = vsel %vm516, %v448, %v515
        %vm518 = vcmp.eq.f32.partialorder %v448, 0.0
        %v519 = vand.u32 %v448, 2147483648
        %v520 = vsel %vm518, %v519, %v517
        %v521 = vrsqrt.pop %v449
        %v522 = vmul.f32 %v449, %v521
        %vm523 = vcmp.eq.f32.partialorder %v449, inf
        %v524 = vsel %vm523, %v449, %v522
        %vm525 = vcmp.eq.f32.partialorder %v449, 0.0
        %v526 = vand.u32 %v449, 2147483648
        %v527 = vsel %vm525, %v526, %v524
        %v528 = vrsqrt.pop %v450
        %v529 = vmul.f32 %v450, %v528
        %vm530 = vcmp.eq.f32.partialorder %v450, inf
        %v531 = vsel %vm530, %v450, %v529
        %vm532 = vcmp.eq.f32.partialorder %v450, 0.0
        %v533 = vand.u32 %v450, 2147483648
        %v534 = vsel %vm532, %v533, %v531
        %v535 = vadd.f32 %v457, 1.0
        %v536 = vlog2.pop %v535
        %v537 = vmul.f32 %v536, 0.6931472
        %v538 = vmul.f32 -0.5, %v457
        %v539 = vadd.f32 %v538, 1.0
        %v540 = vmul.f32 %v539, %v457
        %v541 = vand.u32 2147483647, %v457
        %vm542 = vcmp.lt.f32.partialorder %v541, 0.0004427343
        %v543 = vsel %vm542, %v540, %v537
        %v544 = vadd.f32 %v464, 1.0
        %v545 = vlog2.pop %v544
        %v546 = vmul.f32 %v545, 0.6931472
        %v547 = vmul.f32 -0.5, %v464
        %v548 = vadd.f32 %v547, 1.0
        %v549 = vmul.f32 %v548, %v464
        %v550 = vand.u32 2147483647, %v464
        %vm551 = vcmp.lt.f32.partialorder %v550, 0.0004427343
        %v552 = vsel %vm551, %v549, %v546
        %v553 = vadd.f32 %v471, 1.0
        %v554 = vlog2.pop %v553
        %v555 = vmul.f32 %v554, 0.6931472
        %v556 = vmul.f32 -0.5, %v471
        %v557 = vadd.f32 %v556, 1.0
        %v558 = vmul.f32 %v557, %v471
        %v559 = vand.u32 2147483647, %v471
        %vm560 = vcmp.lt.f32.partialorder %v559, 0.0004427343
        %v561 = vsel %vm560, %v558, %v555
        %v562 = vadd.f32 %v478, 1.0
        %v563 = vlog2.pop %v562
        %v564 = vmul.f32 %v563, 0.6931472
        %v565 = vmul.f32 -0.5, %v478
        %v566 = vadd.f32 %v565, 1.0
        %v567 = vmul.f32 %v566, %v478
        %v568 = vand.u32 2147483647, %v478
        %vm569 = vcmp.lt.f32.partialorder %v568, 0.0004427343
        %v570 = vsel %vm569, %v567, %v564
        %v571 = vadd.f32 %v485, 1.0
        %v572 = vlog2.pop %v571
        %v573 = vmul.f32 %v572, 0.6931472
        %v574 = vmul.f32 -0.5, %v485
        %v575 = vadd.f32 %v574, 1.0
        %v576 = vmul.f32 %v575, %v485
        %v577 = vand.u32 2147483647, %v485
        %vm578 = vcmp.lt.f32.partialorder %v577, 0.0004427343
        %v579 = vsel %vm578, %v576, %v573
        %v580 = vadd.f32 %v492, 1.0
        %v581 = vlog2.pop %v580
        %v582 = vmul.f32 %v581, 0.6931472
        %v583 = vmul.f32 -0.5, %v492
        %v584 = vadd.f32 %v583, 1.0
        %v585 = vmul.f32 %v584, %v492
        %v586 = vand.u32 2147483647, %v492
        %vm587 = vcmp.lt.f32.partialorder %v586, 0.0004427343
        %v588 = vsel %vm587, %v585, %v582
        %v589 = vadd.f32 %v499, 1.0
        %v590 = vlog2.pop %v589
        %v591 = vmul.f32 %v590, 0.6931472
        %v592 = vmul.f32 -0.5, %v499
        %v593 = vadd.f32 %v592, 1.0
        %v594 = vmul.f32 %v593, %v499
        %v595 = vand.u32 2147483647, %v499
        %vm596 = vcmp.lt.f32.partialorder %v595, 0.0004427343
        %v597 = vsel %vm596, %v594, %v591
        %v598 = vadd.f32 %v506, 1.0
        %v599 = vlog2.pop %v598
        %v600 = vmul.f32 %v599, 0.6931472
        %v601 = vmul.f32 -0.5, %v506
        %v602 = vadd.f32 %v601, 1.0
        %v603 = vmul.f32 %v602, %v506
        %v604 = vand.u32 2147483647, %v506
        %vm605 = vcmp.lt.f32.partialorder %v604, 0.0004427343
        %v606 = vsel %vm605, %v603, %v600
        %v607 = vadd.f32 %v513, 1.0
        %v608 = vlog2.pop %v607
        %v609 = vmul.f32 %v608, 0.6931472
        %v610 = vmul.f32 -0.5, %v513
        %v611 = vadd.f32 %v610, 1.0
        %v612 = vmul.f32 %v611, %v513
        %v613 = vand.u32 2147483647, %v513
        %vm614 = vcmp.lt.f32.partialorder %v613, 0.0004427343
        %v615 = vsel %vm614, %v612, %v609
        %v616 = vadd.f32 %v520, 1.0
        %v617 = vlog2.pop %v616
        %v618 = vmul.f32 %v617, 0.6931472
        %v619 = vmul.f32 -0.5, %v520
        %v620 = vadd.f32 %v619, 1.0
        %v621 = vmul.f32 %v620, %v520
        %v622 = vand.u32 2147483647, %v520
        %vm623 = vcmp.lt.f32.partialorder %v622, 0.0004427343
        %v624 = vsel %vm623, %v621, %v618
        %v625 = vadd.f32 %v527, 1.0
        %v626 = vlog2.pop %v625
        %v627 = vmul.f32 %v626, 0.6931472
        %v628 = vmul.f32 -0.5, %v527
        %v629 = vadd.f32 %v628, 1.0
        %v630 = vmul.f32 %v629, %v527
        %v631 = vand.u32 2147483647, %v527
        %vm632 = vcmp.lt.f32.partialorder %v631, 0.0004427343
        %v633 = vsel %vm632, %v630, %v627
        %v634 = vadd.f32 %v534, 1.0
        %v635 = vlog2.pop %v634
        %v636 = vmul.f32 %v635, 0.6931472
        %v637 = vmul.f32 -0.5, %v534
        %v638 = vadd.f32 %v637, 1.0
        %v639 = vmul.f32 %v638, %v534
        %v640 = vand.u32 2147483647, %v534
        %vm641 = vcmp.lt.f32.partialorder %v640, 0.0004427343
        %v642 = vsel %vm641, %v639, %v636
        %v643 = vsub.f32 %v597, %v543
        %v644 = vsub.f32 %v606, %v552
        %v645 = vsub.f32 %v615, %v561
        %v646 = vsub.f32 %v624, %v570
        %v647 = vsub.f32 %v633, %v579
        %v648 = vsub.f32 %v642, %v588
        %v649 = vmul.f32 %v643, %v643
        %v650 = vmul.f32 %v644, %v644
        %v651 = vmul.f32 %v645, %v645
        %v652 = vmul.f32 %v646, %v646
        %v653 = vmul.f32 %v647, %v647
        %v654 = vmul.f32 %v648, %v648
        %v655 = vadd.f32 %v649, %v650
        %v656 = vadd.f32 %v655, %v651
        %v657 = vadd.f32 %v656, %v652
        %v658 = vadd.f32 %v657, %v653
        %v659 = vadd.f32 %v658, %v654
        %v660 = vrot.slane %v659, 4
        %v661 = vadd.f32 %v659, %v660
        %v662 = vrot.slane %v661, 2
        %v663 = vadd.f32 %v661, %v662
        %v664 = vrot.slane %v663, 1
        %v665 = vadd.f32 %v663, %v664
        %v666 = vadd.f32 %v665, 0.0
        %667 = vst [vmem:[%s176] sm:$0xff] %v666
        %s668 = sand.u32 %s75, 1
        %s669 = scalar_lea.sflag [#allocation4], %s668
        %s670 = sand.u32 %s75, 1
        %s671 = smul.addr %s670, 8
        %s672 = scalar_lea.vmem [#allocation7], %s671
        // Predicated region
        $region37: #{tpu_custom_call.1} parent=27 // pred_check
          %p673 = pneg %p85
        $region38: #{tpu_custom_call.1} parent=27 // pred_check_branch
          %675 = sbr.rel (%p673) target = $region40
        $region39: #{tpu_custom_call.1} parent=27 // pred_region
          %s677 = ssub.s32 128, 128
          %678 = vsyncadd %s669, %s677
          %s679 = smul.addr %s20, 128
          %s680 = scalar_lea.hbm %s2, %s679
          %s682 = sshll.u32 %s672, 4
          %s683 = int_to_ptr.vmem [resolvable:$true] %s682
          %685 = dma.vmem_to_hbm [thread:$0]  %s683, 128, %s680, %s669
        $region40: #{tpu_custom_call.1} parent=27 // pred_fallthru
          _
      $region28: #{tpu_custom_call.1} parent=5 // pred_fallthru
        _
      %p686 = scmp.le.s32.totalorder 2, %s15
      // Predicated region
      $region41: #{tpu_custom_call.1} parent=5 // pred_check
        %p687 = pneg %p686
      $region42: #{tpu_custom_call.1} parent=5 // pred_check_branch
        %689 = sbr.rel (%p687) target = $region44
      $region43: #{tpu_custom_call.1} parent=5 // pred_region
        %s690 = ssub.s32 %s15, 2
        // Predicated region
        $region45: #{tpu_custom_call.1} parent=43 // pred_check
          %p691 = pneg %p91
        $region46: #{tpu_custom_call.1} parent=43 // pred_check_branch
          %693 = sbr.rel (%p691) target = $region48
        $region47: #{tpu_custom_call.1} parent=43 // pred_region
          %s694 = sand.u32 %s76, 1
          %s695 = scalar_lea.sflag [#allocation4], %s694
          %s696 = sand.u32 %s76, 1
          %s697 = smul.addr %s696, 8
          %s698 = scalar_lea.vmem [#allocation7], %s697
          %699 = dma.done %s695, 128
        $region48: #{tpu_custom_call.1} parent=43 // pred_fallthru
          _
      $region44: #{tpu_custom_call.1} parent=5 // pred_fallthru
        _
    $region6: #{tpu_custom_call.1} parent=1 // loop_footer
      %s19 = sadd.s32 1, %s15
    $region7: #{tpu_custom_call.1} parent=1 // loop_footer_branch
      %14 = sbr.rel target = $region3
    $region8: #{tpu_custom_call.1} parent=1 // loop_exit
      _
    %700 = vsyncpa [#allocation3], 1
    %s701 = scalar_lea.sflag [#allocation3], 1
    %702 = vsyncpa %s701, 1
    %703 = vsyncpa [#allocation6], 1
    %704 = vsyncpa [#allocation4], 1
    %s705 = scalar_lea.sflag [#allocation4], 1
    %706 = vsyncpa %s705, 1

</llo_original>
